<compile_context>
chip_gen: v7x
topology: tpu7x:2x2x1
jax: 0.10.0
libtpu: 0.0.40
codegen_flags: <defaults>
</compile_context>

<pallas_src>
import functools

import jax
import jax.numpy as jnp
from jax.experimental import pallas as pl
from jax.experimental.pallas import tpu as pltpu

_SUBLANES = 8


def _round_up(v, m):
    return ((v + m - 1) // m) * m


def _cdiv(a, b):
    return -(-a // b)


def _choose_tiling(n, *, max_tile=1024, min_grid=2):
    """Pick (tile, grid, padded_n): tile multiple of 8, grid>=2 when possible,
    row-pad waste <= 7 rows."""
    nr = max(_round_up(n, _SUBLANES), _SUBLANES)
    grid = max(min_grid, _cdiv(nr, max_tile))
    grid = max(1, min(grid, nr // _SUBLANES))     # never more tiles than 8-row groups
    tile = _round_up(_cdiv(nr, grid), _SUBLANES)
    grid = _cdiv(nr, tile)
    return tile, grid, tile * grid


def _kernel_svm_kernel(x_ref, ct2_ref, vec_ref, b_ref, o_ref):
    """One batch tile: fused RBF features + linear SVM head.

    x_ref   : (TN, D) f32  sample tile (samples on sublanes, features on lanes)
    ct2_ref : (D, H)  f32  centers^T scaled by 2*exp(-2*log_sigma) per column (resident)
    vec_ref : (3, H)  f32  rows: [s2, ||c||^2 * s2, head weight w]
    b_ref   : (1, 1)  f32  head bias (SMEM scalar)
    o_ref   : (TN, 1) f32  scores
    """
    x = x_ref[...]                                                     # (TN, D)
    v = vec_ref[...]                                                   # (3, H)
    s2 = v[0:1, :]                                                     # (1, H)
    c2s2 = v[1:2, :]                                                   # (1, H)
    w = v[2:3, :]                                                      # (1, H)

    x2 = jnp.sum(x * x, axis=-1, keepdims=True)                        # (TN, 1)
    xc2 = jnp.dot(x, ct2_ref[...], preferred_element_type=jnp.float32)  # (TN, H) = 2*x.c*s2
    # exponent = -(||x||^2 + ||c||^2 - 2 x.c) * s2  <= 0 exactly; clamp numerics.
    arg = jnp.minimum(xc2 - x2 * s2 - c2s2, 0.0)                       # (TN, H)
    feats = jnp.exp(arg)                                               # (TN, H)  EUP

    # SVM linear head on VPU + XLU (keeps MXU free).
    scores = jnp.sum(feats * w, axis=-1, keepdims=True)                # (TN, 1)
    o_ref[...] = (scores + b_ref[0, 0]).astype(o_ref.dtype)


def prepare_kernel_svm_params(centers, log_sigmas, w, b):
    """One-time, call-invariant precompute (hoisted out of the per-call path)."""
    f32 = jnp.float32
    H = centers.shape[0]
    c = centers.astype(f32)                                            # (H, D)
    s2 = jnp.exp(-2.0 * log_sigmas.reshape(1, H).astype(f32))          # (1, H)
    ct2 = (c * (2.0 * s2.reshape(H, 1))).T                             # (D, H)
    c2s2 = jnp.sum(c * c, axis=-1).reshape(1, H) * s2                  # (1, H)
    vec = jnp.concatenate([s2, c2s2, w.reshape(1, H).astype(f32)], axis=0)  # (3, H)
    bias = jnp.asarray(b, f32).reshape(1, 1)
    return ct2, vec, bias


def kernel_svm_apply(x, ct2, vec, bias, *, max_tile=1024):
    """x: (N, D) -> (N, 1) SVM scores."""
    N, D = x.shape
    H = ct2.shape[1]
    tile, grid, Np = _choose_tiling(N, max_tile=max_tile)

    x_p = jnp.pad(x.astype(jnp.float32), ((0, Np - N), (0, 0)))        # row pad only

    # VMEM hint: double-buffered operands + output, never below default, cap for v7x.
    vmem_bytes = 2 * 4 * (tile * D + D * H + 3 * H + tile) + (4 << 20)
    vmem_limit = int(min(max(vmem_bytes, 32 << 20), 64 << 20))

    out = pl.pallas_call(
        _kernel_svm_kernel,
        out_shape=jax.ShapeDtypeStruct((Np, 1), jnp.float32),
        grid_spec=pltpu.PrefetchScalarGridSpec(
            num_scalar_prefetch=0,
            grid=(grid,),
            in_specs=[
                pl.BlockSpec((tile, D), lambda i: (i, 0)),              # X tile (unpadded D)
                pl.BlockSpec((D, H), lambda i: (0, 0)),                 # scaled centers^T
                pl.BlockSpec((3, H), lambda i: (0, 0)),                 # [s2; c2*s2; w]
                pl.BlockSpec(memory_space=pltpu.MemorySpace.SMEM),      # bias scalar
            ],
            out_specs=pl.BlockSpec((tile, 1), lambda i: (i, 0)),
        ),
        compiler_params=pltpu.CompilerParams(
            dimension_semantics=("parallel",),                          # megacore sharding
            vmem_limit_bytes=vmem_limit,
        ),
    )(x_p, ct2, vec, bias)
    return out[:N]


_kernel_svm_apply_jit = jax.jit(kernel_svm_apply)


def kernel_svm(x, centers, log_sigmas, w, b):
    """Convenience one-shot entry point (prepare + apply)."""
    ct2, vec, bias = prepare_kernel_svm_params(centers, log_sigmas, w, b)
    return _kernel_svm_apply_jit(x, ct2, vec, bias)


def kernel_svm_ref(x, centers, log_sigmas, w, b):
    # pure-JAX reference (direct subtraction, matches the PyTorch RBF layer)
    d = jnp.linalg.norm(x[:, None, :] - centers[None, :, :], axis=-1)
    d = d / jnp.exp(log_sigmas.reshape(1, -1))
    feats = jnp.exp(-(d * d))
    return feats @ w.reshape(1, -1).T + jnp.asarray(b).reshape(1, 1)


if __name__ == "__main__":
    N, D, H = 16, 32, 32   # batch, input_dim, hidden_dim

    key = jax.random.PRNGKey(0)
    k_x, k_c, k_w, k_b = jax.random.split(key, 4)

    x = jax.random.normal(k_x, (N, D), dtype=jnp.float32)
    centers = jax.random.normal(k_c, (H, D), dtype=jnp.float32)
    # sigma ~ sqrt(2D) keeps the Gaussian basis in a numerically meaningful range
    log_sigmas = jnp.full((1, H), 0.5 * jnp.log(2.0 * D), dtype=jnp.float32)

    bound = 1.0 / (H ** 0.5)   # nn.Linear(hidden_dim, 1) init range
    w = jax.random.uniform(k_w, (1, H), minval=-bound, maxval=bound, dtype=jnp.float32)
    b = jax.random.uniform(k_b, (1, 1), minval=-bound, maxval=bound, dtype=jnp.float32)

    ct2, vec, bias = prepare_kernel_svm_params(centers, log_sigmas, w, b)
    out = jax.block_until_ready(_kernel_svm_apply_jit(x, ct2, vec, bias))
    ref = kernel_svm_ref(x, centers, log_sigmas, w, b)

    assert out.shape == (N, 1)
    assert jnp.allclose(out, ref, atol=2e-3, rtol=2e-3), (
        f"mismatch vs reference, max abs err {jnp.max(jnp.abs(out - ref))}")

    print("KERNEL_OK")
</pallas_src>

<mosaic_0001>
module attributes {stable_mosaic.version = 11 : i64} {
  func.func @_kernel_svm_kernel(%arg0: i32, %arg1: memref<8x32xf32, #tpu.memory_space<vmem>>, %arg2: memref<32x32xf32, #tpu.memory_space<vmem>>, %arg3: memref<3x32xf32, #tpu.memory_space<vmem>>, %arg4: memref<1x1xf32, #tpu.memory_space<smem>>, %arg5: memref<8x1xf32, #tpu.memory_space<vmem>>) attributes {dimension_semantics = [#tpu.dimension_semantics<parallel>], iteration_bounds = array<i64: 2>, scalar_prefetch = 0 : i64, scratch_operands = 0 : i64, tpu.core_type = #tpu.core_type<tc>, window_params = [{transform_indices = @transform_0, window_bounds = array<i64: 8, 32>}, {pipeline_mode = #tpu.pipeline_mode<synchronous>, transform_indices = @transform_1, window_bounds = array<i64: 32, 32>}, {pipeline_mode = #tpu.pipeline_mode<synchronous>, transform_indices = @transform_2, window_bounds = array<i64: 3, 32>}, {transform_indices = @transform_3, window_bounds = array<i64: 1, 1>}, {transform_indices = @transform_4, window_bounds = array<i64: 8, 1>}]} {
    %c0 = arith.constant 0 : index
    %c0_0 = arith.constant 0 : index
    %0 = vector.load %arg1[%c0, %c0_0] : memref<8x32xf32, #tpu.memory_space<vmem>>, vector<8x32xf32>
    %c0_1 = arith.constant 0 : index
    %c0_2 = arith.constant 0 : index
    %1 = vector.load %arg3[%c0_1, %c0_2] : memref<3x32xf32, #tpu.memory_space<vmem>>, vector<3x32xf32>
    %2 = vector.extract_strided_slice %1 {offsets = [0, 0], sizes = [1, 32], strides = [1, 1]} : vector<3x32xf32> to vector<1x32xf32>
    %3 = vector.extract_strided_slice %1 {offsets = [1, 0], sizes = [1, 32], strides = [1, 1]} : vector<3x32xf32> to vector<1x32xf32>
    %4 = vector.extract_strided_slice %1 {offsets = [2, 0], sizes = [1, 32], strides = [1, 1]} : vector<3x32xf32> to vector<1x32xf32>
    %5 = arith.mulf %0, %0 : vector<8x32xf32>
    %cst = arith.constant dense<0.000000e+00> : vector<8xf32>
    %6 = vector.multi_reduction <add>, %5, %cst [1] : vector<8x32xf32> to vector<8xf32>
    %7 = vector.shape_cast %6 : vector<8xf32> to vector<8x1xf32>
    %c0_3 = arith.constant 0 : index
    %c0_4 = arith.constant 0 : index
    %8 = vector.load %arg2[%c0_3, %c0_4] : memref<32x32xf32, #tpu.memory_space<vmem>>, vector<32x32xf32>
    %cst_5 = arith.constant dense<0.000000e+00> : vector<8x32xf32>
    %9 = tpu.matmul %0, %8, %cst_5 {dimension_numbers = #tpu.dot_dimension_numbers<[1], [0], [0], [1], [0, 0, 1, 1], [], []>} : vector<8x32xf32>, vector<32x32xf32>, vector<8x32xf32> -> vector<8x32xf32>
    %10 = vector.broadcast %7 : vector<8x1xf32> to vector<8x32xf32>
    %11 = vector.broadcast %2 : vector<1x32xf32> to vector<8x32xf32>
    %12 = arith.mulf %10, %11 : vector<8x32xf32>
    %13 = arith.subf %9, %12 : vector<8x32xf32>
    %14 = vector.broadcast %3 : vector<1x32xf32> to vector<8x32xf32>
    %15 = arith.subf %13, %14 : vector<8x32xf32>
    %cst_6 = arith.constant 0.000000e+00 : f32
    %16 = vector.broadcast %cst_6 : f32 to vector<8x32xf32>
    %17 = arith.minimumf %15, %16 : vector<8x32xf32>
    %18 = math.exp %17 : vector<8x32xf32>
    %19 = vector.broadcast %4 : vector<1x32xf32> to vector<8x32xf32>
    %20 = arith.mulf %18, %19 : vector<8x32xf32>
    %cst_7 = arith.constant dense<0.000000e+00> : vector<8xf32>
    %21 = vector.multi_reduction <add>, %20, %cst_7 [1] : vector<8x32xf32> to vector<8xf32>
    %22 = vector.shape_cast %21 : vector<8xf32> to vector<8x1xf32>
    %c0_8 = arith.constant 0 : index
    %c0_9 = arith.constant 0 : index
    %23 = memref.load %arg4[%c0_8, %c0_9] : memref<1x1xf32, #tpu.memory_space<smem>>
    %24 = vector.broadcast %23 : f32 to vector<8x1xf32>
    %25 = arith.addf %22, %24 : vector<8x1xf32>
    %c0_10 = arith.constant 0 : index
    %c0_11 = arith.constant 0 : index
    %26 = vector.load %arg5[%c0_10, %c0_11] : memref<8x1xf32, #tpu.memory_space<vmem>>, vector<8x1xf32>
    tpu.vector_store %arg5[%c0_10, %c0_11], %25 {strides = array<i32>} : memref<8x1xf32, #tpu.memory_space<vmem>>, vector<8x1xf32>,
    return
  }
  func.func @transform_0(%arg0: i32) -> (i32, i32) {
    %c0_i32 = arith.constant 0 : i32
    %c0_i32_0 = arith.constant 0 : i32
    return %arg0, %c0_i32 : i32, i32
  }
  func.func @transform_1(%arg0: i32) -> (i32, i32) {
    %c0_i32 = arith.constant 0 : i32
    %c0_i32_0 = arith.constant 0 : i32
    %c0_i32_1 = arith.constant 0 : i32
    return %c0_i32, %c0_i32_0 : i32, i32
  }
  func.func @transform_2(%arg0: i32) -> (i32, i32) {
    %c0_i32 = arith.constant 0 : i32
    %c0_i32_0 = arith.constant 0 : i32
    %c0_i32_1 = arith.constant 0 : i32
    return %c0_i32, %c0_i32_0 : i32, i32
  }
  func.func @transform_3(%arg0: i32) -> (i32, i32) {
    %c0_i32 = arith.constant 0 : i32
    %c0_i32_0 = arith.constant 0 : i32
    %c0_i32_1 = arith.constant 0 : i32
    return %c0_i32, %c0_i32_0 : i32, i32
  }
  func.func @transform_4(%arg0: i32) -> (i32, i32) {
    %c0_i32 = arith.constant 0 : i32
    %c0_i32_0 = arith.constant 0 : i32
    return %arg0, %c0_i32 : i32, i32
  }
}

</mosaic_0001>

<llo_original>
// kernel: kernel_svm_apply.1
$region0: #{kernel_svm_apply.1}
  #allocation0 [shape = 'u32[]', space=smem, size = 0x4, offset = 0x4, fixed_abs, tag = 'smem constant byte address 0x4 - core index']
  #allocation1 [shape = 'u32[144,128]{1,0:T(1,128)}', space=vmem, size = 0x12000, scoped, tag = 'internal scratch']
  #allocation2 [shape = 'f32[1,1]{1,0:T(1,128)S(6)}', space=smem, size = 0x200, scoped, tag = 'scoped memory for kernel_svm_apply.1']
  %s0 = inlined_call_operand.hbm [shape: f32[16,32], index: 0, kind: input, shape index: {}]
  %s1 = inlined_call_operand.hbm [shape: f32[32,32], index: 1, kind: input, shape index: {}]
  %s2 = inlined_call_operand.vmem [shape: f32[3,32], index: 2, kind: input, shape index: {}]
  %s3 = inlined_call_operand.<no memory space> [shape: f32[1,1], index: 3, kind: input, shape index: {}]
  %s4 = inlined_call_operand.vmem [shape: f32[16,1], index: 4, kind: output, shape index: {}]
  %s5 = sld [smem:[#allocation0]]
  $region57: #{kernel_svm_apply.1} parent=0
    _
  %s7 = ssub.s32 1, %s5
  %s8 = scalar_select 0, %s7, %s5
  %9 = sst [smem:[#allocation2]] %s3
  $region1: #{kernel_svm_apply.1} parent=0
    #allocation3 [shape = 'u8[8192]{0}', space=vmem, size = 0x2000, scoped, tag = 'input window, operand 0']
    #allocation4 [shape = 's32[2]{0}', space=sflag, size = 0x8, scoped, tag = 'scoped memory for kernel_svm_apply.1']
    #allocation5 [shape = 'u8[16384]{0}', space=vmem, size = 0x4000, scoped, tag = 'input window, operand 1, single buffered']
    #allocation6 [shape = 's32[1]{0}', space=sflag, size = 0x4, scoped, tag = 'scoped memory for kernel_svm_apply.1']
    %10 = vsyncpa [#allocation4], 0
    %s11 = scalar_lea.sflag [#allocation4], 1
    %12 = vsyncpa %s11, 0
    %13 = vsyncpa [#allocation6], 0
    loop: start=0, step=1, limit=4
    $region2: #{kernel_svm_apply.1} parent=1 // loop_pre_header
      _
    $region3: #{kernel_svm_apply.1} parent=1 // loop_header
      %s15 = sphi 0, %s19
      %p16 = scmp.ge.s32.totalorder %s15, 4
      %s25 = sphi 0, %s27
      %s28 = sphi 0, %s25
      %s29 = sphi 0, %s28
      %s45 = sphi 0, %s29
      %s49 = sphi 0, %s49
      %s51 = sphi 0, %s49
      %s52 = sphi 0, %s51
      %s66 = sphi 0, %s52
      %s70 = sphi 0, %s70
      %s72 = sphi 0, %s70
      %s73 = sphi 0, %s72
      %s87 = sphi 0, %s73
      %s91 = sphi 0, %s91
      %s93 = sphi 0, %s91
      %s94 = sphi 0, %s93
      %s108 = sphi 0, %s94
      %s114 = sphi 0, %s116
      %s117 = sphi 0, %s114
      %s118 = sphi 0, %s117
      %s134 = sphi 0, %s118
    $region4: #{kernel_svm_apply.1} parent=1 // loop_header_branch
      %18 = sbr.rel (%p16) target = $region8
    $region5: #{kernel_svm_apply.1} parent=1 // loop_body
      %s20 = ssub.s32 %s15, 1
      %s21 = ssub.s32 %s15, 2
      %s22 = sadd.s32 %s15, 1
      %s23 = ssub.s32 %s15, %s22
      %p24 = scmp.eq.s32.totalorder %s23, 0
      %s26 = sadd.s32 %s25, 1
      %s27 = scalar_select %p24, %s25, %s26
      %p30 = pneg %p24
      %p31 = scmp.eq.s32.totalorder %s15, 1
      %p32 = por %p30, %p31
      %p33 = scmp.ne.s32.totalorder %s25, %s28
      %p34 = scmp.eq.s32.totalorder %s15, 0
      %p35 = por %p33, %p34
      %p36 = scmp.ne.s32.totalorder %s25, %s28
      %p37 = scmp.eq.s32.totalorder %s20, 1
      %p38 = por %p36, %p37
      %p39 = scmp.ne.s32.totalorder %s28, %s29
      %p40 = scmp.eq.s32.totalorder %s20, 0
      %p41 = por %p39, %p40
      %p42 = scmp.ne.s32.totalorder %s28, %s29
      %p43 = scmp.eq.s32.totalorder %s21, 1
      %p44 = por %p42, %p43
      %p46 = scmp.ne.s32.totalorder %s29, %s45
      %p47 = scmp.eq.s32.totalorder %s21, 0
      %p48 = por %p46, %p47
      %s50 = sadd.s32 %s49, 1
      %p53 = scmp.eq.s32.totalorder %s15, 1
      %p54 = scmp.ne.s32.totalorder %s49, %s51
      %p55 = scmp.eq.s32.totalorder %s15, 0
      %p56 = por %p54, %p55
      %p57 = scmp.ne.s32.totalorder %s49, %s51
      %p58 = scmp.eq.s32.totalorder %s20, 1
      %p59 = por %p57, %p58
      %p60 = scmp.ne.s32.totalorder %s51, %s52
      %p61 = scmp.eq.s32.totalorder %s20, 0
      %p62 = por %p60, %p61
      %p63 = scmp.ne.s32.totalorder %s51, %s52
      %p64 = scmp.eq.s32.totalorder %s21, 1
      %p65 = por %p63, %p64
      %p67 = scmp.ne.s32.totalorder %s52, %s66
      %p68 = scmp.eq.s32.totalorder %s21, 0
      %p69 = por %p67, %p68
      %s71 = sadd.s32 %s70, 1
      %p74 = scmp.eq.s32.totalorder %s15, 1
      %p75 = scmp.ne.s32.totalorder %s70, %s72
      %p76 = scmp.eq.s32.totalorder %s15, 0
      %p77 = por %p75, %p76
      %p78 = scmp.ne.s32.totalorder %s70, %s72
      %p79 = scmp.eq.s32.totalorder %s20, 1
      %p80 = por %p78, %p79
      %p81 = scmp.ne.s32.totalorder %s72, %s73
      %p82 = scmp.eq.s32.totalorder %s20, 0
      %p83 = por %p81, %p82
      %p84 = scmp.ne.s32.totalorder %s72, %s73
      %p85 = scmp.eq.s32.totalorder %s21, 1
      %p86 = por %p84, %p85
      %p88 = scmp.ne.s32.totalorder %s73, %s87
      %p89 = scmp.eq.s32.totalorder %s21, 0
      %p90 = por %p88, %p89
      %s92 = sadd.s32 %s91, 1
      %p95 = scmp.eq.s32.totalorder %s15, 1
      %p96 = scmp.ne.s32.totalorder %s91, %s93
      %p97 = scmp.eq.s32.totalorder %s15, 0
      %p98 = por %p96, %p97
      %p99 = scmp.ne.s32.totalorder %s91, %s93
      %p100 = scmp.eq.s32.totalorder %s20, 1
      %p101 = por %p99, %p100
      %p102 = scmp.ne.s32.totalorder %s93, %s94
      %p103 = scmp.eq.s32.totalorder %s20, 0
      %p104 = por %p102, %p103
      %p105 = scmp.ne.s32.totalorder %s93, %s94
      %p106 = scmp.eq.s32.totalorder %s21, 1
      %p107 = por %p105, %p106
      %p109 = scmp.ne.s32.totalorder %s94, %s108
      %p110 = scmp.eq.s32.totalorder %s21, 0
      %p111 = por %p109, %p110
      %s112 = ssub.s32 %s15, %s22
      %p113 = scmp.eq.s32.totalorder %s112, 0
      %s115 = sadd.s32 %s114, 1
      %s116 = scalar_select %p113, %s114, %s115
      %p119 = pneg %p113
      %p120 = scmp.eq.s32.totalorder %s15, 1
      %p121 = por %p119, %p120
      %p122 = scmp.ne.s32.totalorder %s114, %s117
      %p123 = scmp.eq.s32.totalorder %s15, 0
      %p124 = por %p122, %p123
      %p125 = scmp.ne.s32.totalorder %s114, %s117
      %p126 = scmp.eq.s32.totalorder %s20, 1
      %p127 = por %p125, %p126
      %p128 = scmp.ne.s32.totalorder %s117, %s118
      %p129 = scmp.eq.s32.totalorder %s20, 0
      %p130 = por %p128, %p129
      %p131 = scmp.ne.s32.totalorder %s117, %s118
      %p132 = scmp.eq.s32.totalorder %s21, 1
      %p133 = por %p131, %p132
      %p135 = scmp.ne.s32.totalorder %s118, %s134
      %p136 = scmp.eq.s32.totalorder %s21, 0
      %p137 = por %p135, %p136
      %p138 = scmp.le.s32.totalorder 1, %s15
      %p139 = scmp.lt.s32.totalorder %s15, 3
      %p140 = pnand %p138, %p139
      %p141 = pneg %p140
      // Predicated region
      $region9: #{kernel_svm_apply.1} parent=5 // pred_check
        _
      $region10: #{kernel_svm_apply.1} parent=5 // pred_check_branch
        %143 = sbr.rel (%p140) target = $region12
      $region11: #{kernel_svm_apply.1} parent=5 // pred_region
        %s144 = ssub.s32 %s15, 1
        // Predicated region
        $region13: #{kernel_svm_apply.1} parent=11 // pred_check
          %p145 = pneg %p62
        $region14: #{kernel_svm_apply.1} parent=11 // pred_check_branch
          %147 = sbr.rel (%p145) target = $region16
        $region15: #{kernel_svm_apply.1} parent=11 // pred_region
          %s149 = ssub.s32 512, 512
          %150 = vsyncadd [#allocation6], %s149
          %s151 = sshll.u32 [#allocation5], 4
          %s152 = int_to_ptr.vmem [resolvable:$true] %s151
          %157 = dma.hbm_to_vmem [thread:$0]  %s1, 512, %s152, [#allocation6], 128, 128, 8
        $region16: #{kernel_svm_apply.1} parent=11 // pred_fallthru
          _
        // Predicated region
        $region17: #{kernel_svm_apply.1} parent=11 // pred_check
          %p158 = pneg %p83
        $region18: #{kernel_svm_apply.1} parent=11 // pred_check_branch
          %160 = sbr.rel (%p158) target = $region20
        $region19: #{kernel_svm_apply.1} parent=11 // pred_region
          _
        $region20: #{kernel_svm_apply.1} parent=11 // pred_fallthru
          _
        // Predicated region
        $region21: #{kernel_svm_apply.1} parent=11 // pred_check
          %p161 = pneg %p104
        $region22: #{kernel_svm_apply.1} parent=11 // pred_check_branch
          %163 = sbr.rel (%p161) target = $region24
        $region23: #{kernel_svm_apply.1} parent=11 // pred_region
          _
        $region24: #{kernel_svm_apply.1} parent=11 // pred_fallthru
          _
      $region12: #{kernel_svm_apply.1} parent=5 // pred_fallthru
        _
      %p164 = scmp.lt.s32.totalorder %s15, 2
      // Predicated region
      $region25: #{kernel_svm_apply.1} parent=5 // pred_check
        %p165 = pneg %p164
      $region26: #{kernel_svm_apply.1} parent=5 // pred_check_branch
        %167 = sbr.rel (%p165) target = $region28
      $region27: #{kernel_svm_apply.1} parent=5 // pred_region
        // Predicated region
        $region29: #{kernel_svm_apply.1} parent=27 // pred_check
          %p168 = pneg %p35
        $region30: #{kernel_svm_apply.1} parent=27 // pred_check_branch
          %170 = sbr.rel (%p168) target = $region32
        $region31: #{kernel_svm_apply.1} parent=27 // pred_region
          %s171 = sand.u32 %s25, 1
          %s172 = scalar_lea.sflag [#allocation4], %s171
          %s173 = sand.u32 %s25, 1
          %s174 = smul.addr %s173, 8
          %s175 = scalar_lea.vmem [#allocation3], %s174
          %s177 = ssub.s32 128, 128
          %178 = vsyncadd %s172, %s177
          %s179 = smul.addr %s15, 128
          %s180 = scalar_lea.hbm %s0, %s179
          %s182 = sshll.u32 %s175, 4
          %s183 = int_to_ptr.vmem [resolvable:$true] %s182
          %185 = dma.hbm_to_vmem [thread:$0]  %s180, 128, %s183, %s172
        $region32: #{kernel_svm_apply.1} parent=27 // pred_fallthru
          _
      $region28: #{kernel_svm_apply.1} parent=5 // pred_fallthru
        _
      %p186 = scmp.le.s32.totalorder 1, %s15
      %p187 = scmp.lt.s32.totalorder %s15, 3
      %p188 = pnand %p186, %p187
      %p189 = pneg %p188
      // Predicated region
      $region33: #{kernel_svm_apply.1} parent=5 // pred_check
        _
      $region34: #{kernel_svm_apply.1} parent=5 // pred_check_branch
        %191 = sbr.rel (%p188) target = $region36
      $region35: #{kernel_svm_apply.1} parent=5 // pred_region
        %s192 = ssub.s32 %s15, 1
        %s193 = sand.u32 %s28, 1
        %s194 = scalar_lea.sflag [#allocation4], %s193
        %s195 = sand.u32 %s28, 1
        %s196 = smul.addr %s195, 8
        %s197 = scalar_lea.vmem [#allocation3], %s196
        // Predicated region
        $region37: #{kernel_svm_apply.1} parent=35 // pred_check
          %p198 = pneg %p41
        $region38: #{kernel_svm_apply.1} parent=35 // pred_check_branch
          %200 = sbr.rel (%p198) target = $region40
        $region39: #{kernel_svm_apply.1} parent=35 // pred_region
          %201 = dma.done %s194, 128
        $region40: #{kernel_svm_apply.1} parent=35 // pred_fallthru
          _
        // Predicated region
        $region41: #{kernel_svm_apply.1} parent=35 // pred_check
          %p202 = pneg %p62
        $region42: #{kernel_svm_apply.1} parent=35 // pred_check_branch
          %204 = sbr.rel (%p202) target = $region44
        $region43: #{kernel_svm_apply.1} parent=35 // pred_region
          %205 = dma.done [#allocation6], 512
        $region44: #{kernel_svm_apply.1} parent=35 // pred_fallthru
          _
        %s206 = sand.u32 %s28, 1
        %s207 = scalar_lea.sflag [#allocation4], %s206
        %s208 = sand.u32 %s28, 1
        %s209 = smul.addr %s208, 8
        %s210 = scalar_lea.vmem [#allocation3], %s209
        %p211 = pneg %p41
        %p212 = pneg %p38
        %p213 = pneg %p62
        %p214 = pneg %p59
        %p215 = pneg %p83
        %p216 = pneg %p80
        %p217 = pneg %p104
        %p218 = pneg %p101
        %p219 = pneg %p130
        %p220 = pneg %p127
        %p221 = scmp.lt.s32.totalorder %s20, 1
        %s222 = scalar_select %p221, %s20, 1
        %s223 = smul.addr %s222, 8
        %s224 = scalar_lea.vmem %s4, %s223
        %p225 = scmp.lt.s32.totalorder %s20, 1
        %s226 = scalar_select %p225, %s20, 1
        %s227 = smul.addr %s226, 8
        %s228 = scalar_lea.vmem %s4, %s227
        %v229 = vld [vmem:[%s197] sm:$0xff]
        %v230 = vld [vmem:[%s2] sm:$0x7]
        %v231 = vmul.f32 %v229, %v229
        %vm232 = vcmask 261120
        %v233 = vsel %vm232, %v231, 0.0
        %234 = vadd.xlane.f32.xlu0 %v233
        %v235 = vpop.xlane.xlu0 %234
        %v236 = vld [vmem:[#allocation5] sm:$0xff]
        %v237 = vld [vmem:[#allocation5 + $0x8] sm:$0xff]
        %v238 = vld [vmem:[#allocation5 + $0x10] sm:$0xff]
        %v239 = vld [vmem:[#allocation5 + $0x18] sm:$0xff]
        %v241 = vsel %vm232, %v229, 0
        %243 = vmatprep.subr.mxu0 0.0
        %244 = vmatpush1.msra.mxu0 %v236
        %245 = vmatprep.subr.mxu0 0.0
        %246 = vmatpush1.msra.mxu0 %v237
        %247 = vmatprep.subr.mxu0 0.0
        %248 = vmatpush1.msra.mxu0 %v238
        %249 = vmatprep.subr.mxu0 0.0
        %250 = vmatpush1.msra.mxu0 %v239
        %251 = vmatprep.subr.mxu0 0.0
        %252 = vmatpush1.msra.mxu0 0.0
        %253 = vmatprep.subr.mxu0 0.0
        %254 = vmatpush1.msra.mxu0 0.0
        %255 = vmatprep.subr.mxu0 0.0
        %256 = vmatpush1.msra.mxu0 0.0
        %257 = vmatprep.subr.mxu0 0.0
        %258 = vmatpush1.msra.mxu0 0.0
        %259 = vmatprep.subr.mxu0 0.0
        %260 = vmatpush1.msra.mxu0 0.0
        %261 = vmatprep.subr.mxu0 0.0
        %262 = vmatpush1.msra.mxu0 0.0
        %263 = vmatprep.subr.mxu0 0.0
        %264 = vmatpush1.msra.mxu0 0.0
        %265 = vmatprep.subr.mxu0 0.0
        %266 = vmatpush1.msra.mxu0 0.0
        %267 = vmatprep.subr.mxu0 0.0
        %268 = vmatpush1.msra.mxu0 0.0
        %269 = vmatprep.subr.mxu0 0.0
        %270 = vmatpush1.msra.mxu0 0.0
        %271 = vmatprep.subr.mxu0 0.0
        %272 = vmatpush1.msra.mxu0 0.0
        %273 = vmatprep.subr.mxu0 0.0
        %274 = vmatpush1.msra.mxu0 0.0
        %275 = vmatprep.subr.mxu0 0.0
        %276 = vmatpush1.msra.mxu0 0.0
        %277 = vmatprep.subr.mxu0 0.0
        %278 = vmatpush1.msra.mxu0 0.0
        %279 = vmatprep.subr.mxu0 0.0
        %280 = vmatpush1.msra.mxu0 0.0
        %281 = vmatprep.subr.mxu0 0.0
        %282 = vmatpush1.msra.mxu0 0.0
        %283 = vmatprep.subr.mxu0 0.0
        %284 = vmatpush1.msra.mxu0 0.0
        %285 = vmatprep.subr.mxu0 0.0
        %286 = vmatpush1.msra.mxu0 0.0
        %287 = vmatprep.subr.mxu0 0.0
        %288 = vmatpush1.msra.mxu0 0.0
        %289 = vmatprep.subr.mxu0 0.0
        %290 = vmatpush1.msra.mxu0 0.0
        %291 = vmatprep.subr.mxu0 0.0
        %292 = vmatpush1.msra.mxu0 0.0
        %293 = vmatprep.subr.mxu0 0.0
        %294 = vmatpush1.msra.mxu0 0.0
        %295 = vmatprep.subr.mxu0 0.0
        %296 = vmatpush1.msra.mxu0 0.0
        %297 = vmatprep.subr.mxu0 0.0
        %298 = vmatpush1.msra.mxu0 0.0
        %299 = vmatprep.subr.mxu0 0.0
        %300 = vmatpush1.msra.mxu0 0.0
        %301 = vmatprep.subr.mxu0 0.0
        %302 = vmatpush1.msra.mxu0 0.0
        %303 = vmatprep.subr.mxu0 0.0
        %304 = vmatpush1.msra.mxu0 0.0
        %305 = vmatprep.subr.mxu0 0.0
        %306 = vmatpush1.msra.mxu0 0.0
        %307 = vmatprep.mubr.f32.mxu0 0.0
        %308 = vmatmul.mubr.f32.gmra.mrb[0].mxu0 %v241
        %v309 = vpop.f32.mrb[0].mxu0
        %v310 = vadd.f32 0.0, %v309
        %v311 = vpop.f32.mrb[0].mxu0
        %312 = vdwg.mxu0
        %v313 = vlaneseq
        %v314 = vshrl.u32 %v313, 7
        %v315 = vsub.s32 0, %v314
        %v316 = vrot.slane %v230, %v315
        %v317 = vmul.f32 %v235, %v316
        %v318 = vsub.f32 %v310, %v317
        %v319 = vlaneseq
        %v320 = vshrl.u32 %v319, 7
        %v321 = vsub.s32 1, %v320
        %v322 = vrot.slane %v230, %v321
        %v323 = vsub.f32 %v318, %v322
        %v324 = vmin.f32 %v323, 0.0
        %v325 = vmul.f32 %v324, 1.442695
        %v326 = vpow.pop %v325
        %v327 = vlaneseq
        %v328 = vshrl.u32 %v327, 7
        %v329 = vsub.s32 2, %v328
        %v330 = vrot.slane %v230, %v329
        %v331 = vmul.f32 %v326, %v330
        %v332 = vsel %vm232, %v331, 0.0
        %333 = vadd.xlane.f32.xlu0 %v332
        %v334 = vpop.xlane.xlu0 %333
        %s335 = sld [smem:[#allocation2]]
        %v336 = vstv %s335
        %v337 = vadd.f32 %v334, %v336
        %vm338 = vcmask 7168
        %339 = vst.msk [vmem:[%s228] sm:$0xff] %vm338, %v337
        %p340 = scmp.lt.s32.totalorder %s20, 1
        %s341 = scalar_select %p340, %s20, 1
        %s342 = smul.addr %s341, 8
        %s343 = scalar_lea.vmem %s4, %s342
        // Predicated region
        $region45: #{kernel_svm_apply.1} parent=35 // pred_check
          %p344 = pneg %p127
        $region46: #{kernel_svm_apply.1} parent=35 // pred_check_branch
          %346 = sbr.rel (%p344) target = $region48
        $region47: #{kernel_svm_apply.1} parent=35 // pred_region
          _
        $region48: #{kernel_svm_apply.1} parent=35 // pred_fallthru
          _
      $region36: #{kernel_svm_apply.1} parent=5 // pred_fallthru
        _
      %p347 = scmp.le.s32.totalorder 2, %s15
      // Predicated region
      $region49: #{kernel_svm_apply.1} parent=5 // pred_check
        %p348 = pneg %p347
      $region50: #{kernel_svm_apply.1} parent=5 // pred_check_branch
        %350 = sbr.rel (%p348) target = $region52
      $region51: #{kernel_svm_apply.1} parent=5 // pred_region
        %s351 = ssub.s32 %s15, 2
        // Predicated region
        $region53: #{kernel_svm_apply.1} parent=51 // pred_check
          %p352 = pneg %p133
        $region54: #{kernel_svm_apply.1} parent=51 // pred_check_branch
          %354 = sbr.rel (%p352) target = $region56
        $region55: #{kernel_svm_apply.1} parent=51 // pred_region
          %p355 = scmp.lt.s32.totalorder %s21, 1
          %s356 = scalar_select %p355, %s21, 1
          %s357 = smul.addr %s356, 8
          %s358 = scalar_lea.vmem %s4, %s357
        $region56: #{kernel_svm_apply.1} parent=51 // pred_fallthru
          _
      $region52: #{kernel_svm_apply.1} parent=5 // pred_fallthru
        _
    $region6: #{kernel_svm_apply.1} parent=1 // loop_footer
      %s19 = sadd.s32 1, %s15
    $region7: #{kernel_svm_apply.1} parent=1 // loop_footer_branch
      %14 = sbr.rel target = $region3
    $region8: #{kernel_svm_apply.1} parent=1 // loop_exit
      _
    %359 = vsyncpa [#allocation4], 1
    %s360 = scalar_lea.sflag [#allocation4], 1
    %361 = vsyncpa %s360, 1
    %362 = vsyncpa [#allocation6], 1

</llo_original>
